<compile_context>
chip_gen: v6e
topology: v6e:2x2x1
jax: 0.10.0
libtpu: 0.0.40
codegen_flags: <defaults>
</compile_context>

<pallas_src>
import functools
import math

import jax
import jax.numpy as jnp
from jax.experimental import pallas as pl
from jax.experimental.pallas import tpu as pltpu


def _round_up(v, mult):
    return ((v + mult - 1) // mult) * mult


_K_TILE_CANDIDATES = (1024, 512, 256, 128)
_K_FULL_TILE_MAX = 512  # dim_in at or below this -> single full-K block, no padding


def _pick_tile_k(dim_in_pad, tk_max):
    """Largest K tile <= tk_max that divides dim_in_pad (falls back to full K)."""
    if dim_in_pad <= tk_max:
        return dim_in_pad
    for cand in _K_TILE_CANDIDATES:
        if cand <= tk_max and dim_in_pad % cand == 0:
            return cand
    return dim_in_pad


def prepack_swiglu_params(weight, bias=None, *, tile_n=1024):
    """One-time repack of nn.Linear(dim_in, 2*dim_out) params for swiglu_pallas.

    Call this once at init (NOT per forward pass).

    Args:
      weight: (2*dim_out, dim_in) -- PyTorch nn.Linear layout.
      bias:   (2*dim_out,) or None.
      tile_n: output-channel tile the kernel will use (multiple of 128 if
              dim_out > tile_n).

    Returns:
      w_packed: (n_blocks, dim_in_pad, 2*tile_n) -- per N-block [W_h | W_g]
                columns, zero-padded along K and N.
      b_packed: (n_blocks, 1, 2*tile_n)          -- per N-block [b_h | b_g].
    """
    out2, dim_in = weight.shape
    assert out2 % 2 == 0, "weight must have shape (2*dim_out, dim_in)"
    dim_out = out2 // 2

    if dim_out <= tile_n:
        tn = dim_out
    else:
        assert tile_n % 128 == 0, "tile_n must be a multiple of 128"
        tn = tile_n
    n_blocks = pl.cdiv(dim_out, tn)
    dim_out_pad = n_blocks * tn

    # Zero-pad dim_in to a multiple of 128 when it is large and non-divisible,
    # so the kernel can always use a small K tile (padded rows contribute 0).
    if dim_in <= _K_FULL_TILE_MAX or dim_in % 128 == 0:
        dim_in_pad = dim_in
    else:
        dim_in_pad = _round_up(dim_in, 128)

    if bias is None:
        bias = jnp.zeros((2 * dim_out,), weight.dtype)

    pad_k = dim_in_pad - dim_in
    pad_n = dim_out_pad - dim_out
    w_h = jnp.pad(weight[:dim_out].T, ((0, pad_k), (0, pad_n)))
    w_g = jnp.pad(weight[dim_out:].T, ((0, pad_k), (0, pad_n)))
    w_h = w_h.reshape(dim_in_pad, n_blocks, tn)
    w_g = w_g.reshape(dim_in_pad, n_blocks, tn)
    w_packed = jnp.transpose(jnp.concatenate([w_h, w_g], axis=-1), (1, 0, 2))

    b_h = jnp.pad(bias[:dim_out], (0, pad_n)).reshape(n_blocks, 1, tn)
    b_g = jnp.pad(bias[dim_out:], (0, pad_n)).reshape(n_blocks, 1, tn)
    b_packed = jnp.concatenate([b_h, b_g], axis=-1)

    return w_packed, b_packed


def _swiglu_kernel(x_ref, w_ref, b_ref, o_ref, acc_ref, *, dim_in, k_span, cast_bf16):
    k = pl.program_id(2)

    @pl.when(k == 0)
    def _init():
        acc_ref[...] = jnp.zeros_like(acc_ref)

    x = x_ref[...]
    w = w_ref[0]                     # (tile_k, 2*tile_n): [W_h block | W_g block]

    # Static branch: only generated when the K grid overruns the true dim_in
    # (padded / non-divisible case).  The padded weight rows are already zero,
    # so zeroing the undefined x columns makes the partial block contribute 0.
    if k_span != dim_in:
        tile_k = x.shape[-1]
        col = k * tile_k + jax.lax.broadcasted_iota(jnp.int32, x.shape, 1)
        x = jnp.where(col < dim_in, x, jnp.zeros((), x.dtype))

    if cast_bf16:
        x = x.astype(jnp.bfloat16)
        w = w.astype(jnp.bfloat16)

    # Single fused MXU stream per K step; f32 accumulation.
    acc_ref[...] += jnp.dot(x, w, preferred_element_type=jnp.float32)

    @pl.when(k == pl.num_programs(2) - 1)
    def _finalize():
        tn = o_ref.shape[-1]
        acc = acc_ref[...] + b_ref[0]          # (tile_m, 2*tn) + (1, 2*tn)
        g = acc[:, tn:]
        gate = g * jax.nn.sigmoid(g)           # SiLU(g)
        o_ref[...] = (acc[:, :tn] * gate).astype(o_ref.dtype)


@functools.partial(jax.jit, static_argnames=("dim_out", "tm", "tk", "use_bf16_matmul"))
def swiglu_pallas(x, w_packed, b_packed, *, dim_out, tm=1024, tk=512,
                  use_bf16_matmul=False):
    """Fused SwiGLU forward.  `w_packed`/`b_packed` come from prepack_swiglu_params."""
    dim_in = x.shape[-1]
    n_blocks, dim_in_pad, two_tn = w_packed.shape
    tile_n = two_tn // 2
    assert b_packed.shape == (n_blocks, 1, two_tn)
    assert dim_in <= dim_in_pad
    assert dim_out <= n_blocks * tile_n

    lead_shape = x.shape[:-1]
    m = math.prod(lead_shape) if lead_shape else 1
    x2 = x.reshape(m, dim_in)

    tile_k = _pick_tile_k(dim_in_pad, tk)
    k_blocks = dim_in_pad // tile_k
    assert k_blocks * tile_k == dim_in_pad
    assert dim_in_pad - dim_in < tile_k      # only the last K block may be partial

    tile_m = m if m <= tm else tm

    # --- Per-generation VMEM budget: query the chip, leave ~8 MiB headroom. ---
    try:
        vmem_cap = int(pltpu.get_tpu_info().vmem_capacity_bytes)
    except Exception:
        vmem_cap = 64 << 20                  # conservative (v7x per-TC) fallback
    budget = max(vmem_cap - (8 << 20), 24 << 20)

    x_bytes = jnp.dtype(x.dtype).itemsize
    w_bytes = jnp.dtype(w_packed.dtype).itemsize

    def _est(tm_):
        return (2 * tm_ * tile_k * x_bytes          # x block (double-buffered)
                + 2 * tile_k * two_tn * w_bytes     # weight block (double-buffered)
                + 2 * two_tn * w_bytes              # bias block
                + 2 * tm_ * tile_n * x_bytes        # output block (double-buffered)
                + tm_ * two_tn * 4)                 # f32 accumulator (scratch)

    # Shrink the M tile rather than under-declaring the limit (compile-failure
    # footgun from the review).
    while _est(tile_m) > budget and tile_m > 256:
        tile_m = _round_up(max(tile_m // 2, 8), 8)

    m_blocks = pl.cdiv(m, tile_m)

    # v7x has 2 TensorCores sharded over 'parallel' grid axes: guarantee >= 2
    # blocks along M when both parallel axes would otherwise have a single block.
    if m_blocks == 1 and n_blocks == 1 and m >= 16:
        tile_m = _round_up(max((m + 1) // 2, 8), 8)
        m_blocks = pl.cdiv(m, tile_m)

    est = _est(tile_m)
    vmem_limit = min(max(int(1.3 * est) + (4 << 20), 32 << 20), budget)

    grid = (m_blocks, n_blocks, k_blocks)

    kernel = functools.partial(
        _swiglu_kernel,
        dim_in=dim_in,
        k_span=k_blocks * tile_k,
        cast_bf16=bool(use_bf16_matmul) and x.dtype == jnp.float32,
    )

    out = pl.pallas_call(
        kernel,
        out_shape=jax.ShapeDtypeStruct((m, dim_out), x.dtype),
        grid_spec=pltpu.PrefetchScalarGridSpec(
            num_scalar_prefetch=0,
            grid=grid,
            in_specs=[
                pl.BlockSpec((tile_m, tile_k), lambda i, j, k: (i, k)),
                # TODO(synk): add pipeline_mode=pl.Buffered(3) here if profiling
                # shows exposed weight DMA at small tk on v7x.
                pl.BlockSpec((1, tile_k, two_tn), lambda i, j, k: (j, k, 0)),
                pl.BlockSpec((1, 1, two_tn), lambda i, j, k: (j, 0, 0)),
            ],
            out_specs=pl.BlockSpec((tile_m, tile_n), lambda i, j, k: (i, j)),
            scratch_shapes=[pltpu.VMEM((tile_m, two_tn), jnp.float32)],
        ),
        compiler_params=pltpu.CompilerParams(
            dimension_semantics=("parallel", "parallel", "arbitrary"),
            vmem_limit_bytes=vmem_limit,
        ),
    )(x2, w_packed, b_packed)

    return out.reshape(*lead_shape, dim_out)


def swiglu_reference(x, weight, bias):
    """Pure-JAX reference mirroring the PyTorch module."""
    proj = jnp.einsum("...i,oi->...o", x, weight,
                      precision=jax.lax.Precision.HIGHEST) + bias
    h, g = jnp.split(proj, 2, axis=-1)
    return h * (g * jax.nn.sigmoid(g))


def _make_inputs(key, lead_shape, dim_in, dim_out, dtype=jnp.float32):
    kx, kw, kb = jax.random.split(key, 3)
    x = jax.random.normal(kx, (*lead_shape, dim_in), dtype=dtype)
    bound = 1.0 / (dim_in ** 0.5)
    weight = jax.random.uniform(
        kw, (2 * dim_out, dim_in), dtype=dtype, minval=-bound, maxval=bound
    )
    bias = jax.random.uniform(
        kb, (2 * dim_out,), dtype=dtype, minval=-bound, maxval=bound
    )
    return x, weight, bias


if __name__ == "__main__":
    key = jax.random.PRNGKey(0)
    k1, k2, k3 = jax.random.split(key, 3)

    # 1) Small shapes matching the module spec: (batch, seq, dim_in) -> (..., dim_out).
    batch, seq, dim_in, dim_out = 2, 8, 32, 32
    x, weight, bias = _make_inputs(k1, (batch, seq), dim_in, dim_out)
    w_p, b_p = prepack_swiglu_params(weight, bias)          # one-time init step
    out = jax.block_until_ready(swiglu_pallas(x, w_p, b_p, dim_out=dim_out))
    ref = swiglu_reference(x, weight, bias)
    assert out.shape == (batch, seq, dim_out), out.shape
    assert jnp.allclose(out, ref, atol=1e-5, rtol=1e-5), "mismatch (small)"

    # 2) Real tiling: partial last M tile, 2 N blocks (padded N), 2 K blocks.
    x2, w2, b2 = _make_inputs(k2, (300,), 256, 384)
    w2p, b2p = prepack_swiglu_params(w2, b2, tile_n=256)
    out2 = jax.block_until_ready(
        swiglu_pallas(x2, w2p, b2p, dim_out=384, tm=128, tk=128))
    ref2 = swiglu_reference(x2, w2, b2)
    assert out2.shape == (300, 384), out2.shape
    assert jnp.allclose(out2, ref2, atol=1e-4, rtol=1e-4), "mismatch (tiled)"

    # 3) Non-divisible dim_in > 512: padded-K weights + in-kernel x mask path,
    #    plus the megacore M-split (grid would otherwise be (1,1,K)).
    x3, w3, b3 = _make_inputs(k3, (64,), 600, 256)
    w3p, b3p = prepack_swiglu_params(w3, b3)
    out3 = jax.block_until_ready(swiglu_pallas(x3, w3p, b3p, dim_out=256))
    ref3 = swiglu_reference(x3, w3, b3)
    assert out3.shape == (64, 256), out3.shape
    assert jnp.allclose(out3, ref3, atol=1e-4, rtol=1e-4), "mismatch (padded K)"

    print("KERNEL_OK")
</pallas_src>

<mosaic_0001>
module attributes {stable_mosaic.version = 11 : i64} {
  func.func @_swiglu_kernel(%arg0: i32, %arg1: i32, %arg2: i32, %arg3: memref<8x32xf32, #tpu.memory_space<vmem>>, %arg4: memref<1x32x64xf32, #tpu.memory_space<vmem>>, %arg5: memref<1x1x64xf32, #tpu.memory_space<vmem>>, %arg6: memref<8x32xf32, #tpu.memory_space<vmem>>, %arg7: memref<8x64xf32, #tpu.memory_space<vmem>>) attributes {dimension_semantics = [#tpu.dimension_semantics<parallel>, #tpu.dimension_semantics<parallel>, #tpu.dimension_semantics<arbitrary>], iteration_bounds = array<i64: 2, 1, 1>, scalar_prefetch = 0 : i64, scratch_operands = 1 : i64, tpu.core_type = #tpu.core_type<tc>, window_params = [{transform_indices = @transform_0, window_bounds = array<i64: 8, 32>}, {transform_indices = @transform_1, window_bounds = array<i64: 1, 32, 64>}, {transform_indices = @transform_2, window_bounds = array<i64: 1, 1, 64>}, {transform_indices = @transform_3, window_bounds = array<i64: 8, 32>}]} {
    %c0_i32 = arith.constant 0 : i32
    %0 = arith.cmpi eq, %arg2, %c0_i32 : i32
    %1 = arith.extui %0 : i1 to i32
    %c0_i32_0 = arith.constant 0 : i32
    %2 = arith.cmpi ne, %1, %c0_i32_0 : i32
    scf.if %2 {
      %cst_11 = arith.constant 0.000000e+00 : f32
      %13 = vector.broadcast %cst_11 : f32 to vector<8x64xf32>
      %c0_12 = arith.constant 0 : index
      %c0_13 = arith.constant 0 : index
      %14 = vector.load %arg7[%c0_12, %c0_13] : memref<8x64xf32, #tpu.memory_space<vmem>>, vector<8x64xf32>
      tpu.vector_store %arg7[%c0_12, %c0_13], %13 {strides = array<i32>} : memref<8x64xf32, #tpu.memory_space<vmem>>, vector<8x64xf32>,
    } else {
    }
    %c0 = arith.constant 0 : index
    %c0_1 = arith.constant 0 : index
    %3 = vector.load %arg3[%c0, %c0_1] : memref<8x32xf32, #tpu.memory_space<vmem>>, vector<8x32xf32>
    %c0_2 = arith.constant 0 : index
    %c0_3 = arith.constant 0 : index
    %c0_4 = arith.constant 0 : index
    %4 = vector.load %arg4[%c0_2, %c0_3, %c0_4] : memref<1x32x64xf32, #tpu.memory_space<vmem>>, vector<1x32x64xf32>
    %5 = vector.shape_cast %4 : vector<1x32x64xf32> to vector<32x64xf32>
    %c0_5 = arith.constant 0 : index
    %c0_6 = arith.constant 0 : index
    %6 = vector.load %arg7[%c0_5, %c0_6] : memref<8x64xf32, #tpu.memory_space<vmem>>, vector<8x64xf32>
    %cst = arith.constant dense<0.000000e+00> : vector<8x64xf32>
    %7 = tpu.matmul %3, %5, %cst {dimension_numbers = #tpu.dot_dimension_numbers<[1], [0], [0], [1], [0, 0, 1, 1], [], []>} : vector<8x32xf32>, vector<32x64xf32>, vector<8x64xf32> -> vector<8x64xf32>
    %8 = arith.addf %6, %7 : vector<8x64xf32>
    %c0_7 = arith.constant 0 : index
    %c0_8 = arith.constant 0 : index
    %9 = vector.load %arg7[%c0_7, %c0_8] : memref<8x64xf32, #tpu.memory_space<vmem>>, vector<8x64xf32>
    tpu.vector_store %arg7[%c0_7, %c0_8], %8 {strides = array<i32>} : memref<8x64xf32, #tpu.memory_space<vmem>>, vector<8x64xf32>,
    %c0_i32_9 = arith.constant 0 : i32
    %10 = arith.cmpi eq, %arg2, %c0_i32_9 : i32
    %11 = arith.extui %10 : i1 to i32
    %c0_i32_10 = arith.constant 0 : i32
    %12 = arith.cmpi ne, %11, %c0_i32_10 : i32
    scf.if %12 {
      %c0_11 = arith.constant 0 : index
      %c0_12 = arith.constant 0 : index
      %13 = vector.load %arg7[%c0_11, %c0_12] : memref<8x64xf32, #tpu.memory_space<vmem>>, vector<8x64xf32>
      %c0_13 = arith.constant 0 : index
      %c0_14 = arith.constant 0 : index
      %c0_15 = arith.constant 0 : index
      %14 = vector.load %arg5[%c0_13, %c0_14, %c0_15] : memref<1x1x64xf32, #tpu.memory_space<vmem>>, vector<1x1x64xf32>
      %15 = vector.shape_cast %14 : vector<1x1x64xf32> to vector<1x64xf32>
      %16 = vector.broadcast %15 : vector<1x64xf32> to vector<8x64xf32>
      %17 = arith.addf %13, %16 : vector<8x64xf32>
      %18 = vector.extract_strided_slice %17 {offsets = [0, 32], sizes = [8, 32], strides = [1, 1]} : vector<8x64xf32> to vector<8x32xf32>
      %19 = arith.negf %18 : vector<8x32xf32>
      %20 = math.exp %19 : vector<8x32xf32>
      %cst_16 = arith.constant 1.000000e+00 : f32
      %21 = vector.broadcast %cst_16 : f32 to vector<8x32xf32>
      %22 = arith.addf %21, %20 : vector<8x32xf32>
      %23 = arith.divf %21, %22 : vector<8x32xf32>
      %24 = arith.mulf %18, %23 : vector<8x32xf32>
      %25 = vector.extract_strided_slice %17 {offsets = [0, 0], sizes = [8, 32], strides = [1, 1]} : vector<8x64xf32> to vector<8x32xf32>
      %26 = arith.mulf %25, %24 : vector<8x32xf32>
      %c0_17 = arith.constant 0 : index
      %c0_18 = arith.constant 0 : index
      %27 = vector.load %arg6[%c0_17, %c0_18] : memref<8x32xf32, #tpu.memory_space<vmem>>, vector<8x32xf32>
      tpu.vector_store %arg6[%c0_17, %c0_18], %26 {strides = array<i32>} : memref<8x32xf32, #tpu.memory_space<vmem>>, vector<8x32xf32>,
    } else {
    }
    return
  }
  func.func @transform_0(%arg0: i32, %arg1: i32, %arg2: i32) -> (i32, i32) {
    %c0_i32 = arith.constant 0 : i32
    return %arg0, %arg2 : i32, i32
  }
  func.func @transform_1(%arg0: i32, %arg1: i32, %arg2: i32) -> (i32, i32, i32) {
    %c0_i32 = arith.constant 0 : i32
    %c0_i32_0 = arith.constant 0 : i32
    return %arg1, %arg2, %c0_i32 : i32, i32, i32
  }
  func.func @transform_2(%arg0: i32, %arg1: i32, %arg2: i32) -> (i32, i32, i32) {
    %c0_i32 = arith.constant 0 : i32
    %c0_i32_0 = arith.constant 0 : i32
    %c0_i32_1 = arith.constant 0 : i32
    return %arg1, %c0_i32, %c0_i32_0 : i32, i32, i32
  }
  func.func @transform_3(%arg0: i32, %arg1: i32, %arg2: i32) -> (i32, i32) {
    %c0_i32 = arith.constant 0 : i32
    return %arg0, %arg1 : i32, i32
  }
}

</mosaic_0001>

<llo_original>
// kernel: swiglu_pallas.1
$region0: #{swiglu_pallas.1}
  #allocation0 [shape = 'u32[]', space=smem, size = 0x4, offset = 0x4, fixed_abs, tag = 'smem constant byte address 0x4 - core index']
  #allocation1 [shape = 'u32[144,128]{1,0:T(1,128)}', space=vmem, size = 0x12000, scoped, tag = 'internal scratch']
  #allocation2 [shape = 'f32[8,64]{1,0:T(8,128)}', space=vmem, size = 0x1000, scoped, tag = 'scratch operand']
  %s0 = inlined_call_operand.hbm [shape: f32[16,32], index: 0, kind: input, shape index: {}]
  %s1 = inlined_call_operand.hbm [shape: f32[1,32,64], index: 1, kind: input, shape index: {}]
  %s2 = inlined_call_operand.vmem [shape: f32[1,1,64], index: 2, kind: input, shape index: {}]
  %s3 = inlined_call_operand.hbm [shape: f32[16,32], index: 3, kind: output, shape index: {}]
  %s4 = sld [smem:[#allocation0]]
  $region61: #{swiglu_pallas.1} parent=0
    _
  %s6 = ssub.s32 1, %s4
  %s7 = scalar_select 0, %s6, %s4
  $region1: #{swiglu_pallas.1} parent=0
    #allocation3 [shape = 'u8[8192]{0}', space=vmem, size = 0x2000, scoped, tag = 'input window, operand 0']
    #allocation4 [shape = 's32[2]{0}', space=sflag, size = 0x8, scoped, tag = 'scoped memory for swiglu_pallas.1']
    #allocation5 [shape = 's32[2]{0}', space=sflag, size = 0x8, scoped, tag = 'scoped memory for swiglu_pallas.1']
    #allocation6 [shape = 'u8[16384]{0}', space=vmem, size = 0x4000, scoped, tag = 'input window, operand 1, single buffered']
    #allocation7 [shape = 's32[1]{0}', space=sflag, size = 0x4, scoped, tag = 'scoped memory for swiglu_pallas.1']
    #allocation8 [shape = 'u8[8192]{0}', space=vmem, size = 0x2000, scoped, tag = 'output window, operand 0']
    %8 = vsyncpa [#allocation4], 0
    %s9 = scalar_lea.sflag [#allocation4], 1
    %10 = vsyncpa %s9, 0
    %11 = vsyncpa [#allocation7], 0
    %12 = vsyncpa [#allocation5], 0
    %s13 = scalar_lea.sflag [#allocation5], 1
    %14 = vsyncpa %s13, 0
    loop: start=0, step=1, limit=4
    $region2: #{swiglu_pallas.1} parent=1 // loop_pre_header
      _
    $region3: #{swiglu_pallas.1} parent=1 // loop_header
      %s16 = sphi 0, %s20
      %p17 = scmp.ge.s32.totalorder %s16, 4
      %s23 = sphi 0, %s42
      %s24 = sphi 0, %s38
      %s25 = sphi 0, %s34
      %s26 = sphi 0, %s23
      %s27 = sphi 0, %s24
      %s28 = sphi 0, %s25
      %s29 = sphi 0, %s26
      %s30 = sphi 0, %s27
      %s31 = sphi 0, %s28
      %s47 = sphi 0, %s49
      %s50 = sphi 0, %s47
      %s51 = sphi 0, %s50
      %s67 = sphi 0, %s51
      %s75 = sphi 0, %s77
      %s78 = sphi 0, %s75
      %s79 = sphi 0, %s78
      %s95 = sphi 0, %s79
      %s101 = sphi 0, %s103
      %s104 = sphi 0, %s101
      %s105 = sphi 0, %s104
      %s121 = sphi 0, %s105
      %s129 = sphi 0, %s131
      %s132 = sphi 0, %s129
      %s133 = sphi 0, %s132
      %s149 = sphi 0, %s133
    $region4: #{swiglu_pallas.1} parent=1 // loop_header_branch
      %19 = sbr.rel (%p17) target = $region8
    $region5: #{swiglu_pallas.1} parent=1 // loop_body
      %s21 = ssub.s32 %s16, 1
      %s22 = ssub.s32 %s16, 2
      %s32 = sadd.s32 1, %s25
      %p33 = scmp.ge.s32.totalorder %s32, 1
      %s34 = scalar_select %p33, 0, %s32
      %s35 = sadd.s32 1, %s24
      %s36 = scalar_select %p33, %s35, %s24
      %p37 = scmp.ge.s32.totalorder %s36, 1
      %s38 = scalar_select %p37, 0, %s36
      %s39 = sadd.s32 1, %s23
      %s40 = scalar_select %p37, %s39, %s23
      %p41 = scmp.ge.s32.totalorder %s40, 2
      %s42 = scalar_select %p41, 0, %s40
      %s43 = ssub.s32 %s23, %s42
      %s44 = ssub.s32 %s25, %s34
      %s45 = sor.u32 %s43, %s44
      %p46 = scmp.eq.s32.totalorder %s45, 0
      %s48 = sadd.s32 %s47, 1
      %s49 = scalar_select %p46, %s47, %s48
      %p52 = pneg %p46
      %p53 = scmp.eq.s32.totalorder %s16, 1
      %p54 = por %p52, %p53
      %p55 = scmp.ne.s32.totalorder %s47, %s50
      %p56 = scmp.eq.s32.totalorder %s16, 0
      %p57 = por %p55, %p56
      %p58 = scmp.ne.s32.totalorder %s47, %s50
      %p59 = scmp.eq.s32.totalorder %s21, 1
      %p60 = por %p58, %p59
      %p61 = scmp.ne.s32.totalorder %s50, %s51
      %p62 = scmp.eq.s32.totalorder %s21, 0
      %p63 = por %p61, %p62
      %p64 = scmp.ne.s32.totalorder %s50, %s51
      %p65 = scmp.eq.s32.totalorder %s22, 1
      %p66 = por %p64, %p65
      %p68 = scmp.ne.s32.totalorder %s51, %s67
      %p69 = scmp.eq.s32.totalorder %s22, 0
      %p70 = por %p68, %p69
      %s71 = ssub.s32 %s24, %s38
      %s72 = ssub.s32 %s25, %s34
      %s73 = sor.u32 %s71, %s72
      %p74 = scmp.eq.s32.totalorder %s73, 0
      %s76 = sadd.s32 %s75, 1
      %s77 = scalar_select %p74, %s75, %s76
      %p80 = pneg %p74
      %p81 = scmp.eq.s32.totalorder %s16, 1
      %p82 = por %p80, %p81
      %p83 = scmp.ne.s32.totalorder %s75, %s78
      %p84 = scmp.eq.s32.totalorder %s16, 0
      %p85 = por %p83, %p84
      %p86 = scmp.ne.s32.totalorder %s75, %s78
      %p87 = scmp.eq.s32.totalorder %s21, 1
      %p88 = por %p86, %p87
      %p89 = scmp.ne.s32.totalorder %s78, %s79
      %p90 = scmp.eq.s32.totalorder %s21, 0
      %p91 = por %p89, %p90
      %p92 = scmp.ne.s32.totalorder %s78, %s79
      %p93 = scmp.eq.s32.totalorder %s22, 1
      %p94 = por %p92, %p93
      %p96 = scmp.ne.s32.totalorder %s79, %s95
      %p97 = scmp.eq.s32.totalorder %s22, 0
      %p98 = por %p96, %p97
      %s99 = ssub.s32 %s24, %s38
      %p100 = scmp.eq.s32.totalorder %s99, 0
      %s102 = sadd.s32 %s101, 1
      %s103 = scalar_select %p100, %s101, %s102
      %p106 = pneg %p100
      %p107 = scmp.eq.s32.totalorder %s16, 1
      %p108 = por %p106, %p107
      %p109 = scmp.ne.s32.totalorder %s101, %s104
      %p110 = scmp.eq.s32.totalorder %s16, 0
      %p111 = por %p109, %p110
      %p112 = scmp.ne.s32.totalorder %s101, %s104
      %p113 = scmp.eq.s32.totalorder %s21, 1
      %p114 = por %p112, %p113
      %p115 = scmp.ne.s32.totalorder %s104, %s105
      %p116 = scmp.eq.s32.totalorder %s21, 0
      %p117 = por %p115, %p116
      %p118 = scmp.ne.s32.totalorder %s104, %s105
      %p119 = scmp.eq.s32.totalorder %s22, 1
      %p120 = por %p118, %p119
      %p122 = scmp.ne.s32.totalorder %s105, %s121
      %p123 = scmp.eq.s32.totalorder %s22, 0
      %p124 = por %p122, %p123
      %s125 = ssub.s32 %s23, %s42
      %s126 = ssub.s32 %s24, %s38
      %s127 = sor.u32 %s125, %s126
      %p128 = scmp.eq.s32.totalorder %s127, 0
      %s130 = sadd.s32 %s129, 1
      %s131 = scalar_select %p128, %s129, %s130
      %p134 = pneg %p128
      %p135 = scmp.eq.s32.totalorder %s16, 1
      %p136 = por %p134, %p135
      %p137 = scmp.ne.s32.totalorder %s129, %s132
      %p138 = scmp.eq.s32.totalorder %s16, 0
      %p139 = por %p137, %p138
      %p140 = scmp.ne.s32.totalorder %s129, %s132
      %p141 = scmp.eq.s32.totalorder %s21, 1
      %p142 = por %p140, %p141
      %p143 = scmp.ne.s32.totalorder %s132, %s133
      %p144 = scmp.eq.s32.totalorder %s21, 0
      %p145 = por %p143, %p144
      %p146 = scmp.ne.s32.totalorder %s132, %s133
      %p147 = scmp.eq.s32.totalorder %s22, 1
      %p148 = por %p146, %p147
      %p150 = scmp.ne.s32.totalorder %s133, %s149
      %p151 = scmp.eq.s32.totalorder %s22, 0
      %p152 = por %p150, %p151
      %p153 = scmp.le.s32.totalorder 1, %s16
      %p154 = scmp.lt.s32.totalorder %s16, 3
      %p155 = pnand %p153, %p154
      %p156 = pneg %p155
      // Predicated region
      $region9: #{swiglu_pallas.1} parent=5 // pred_check
        _
      $region10: #{swiglu_pallas.1} parent=5 // pred_check_branch
        %158 = sbr.rel (%p155) target = $region12
      $region11: #{swiglu_pallas.1} parent=5 // pred_region
        %s159 = ssub.s32 %s16, 1
        // Predicated region
        $region13: #{swiglu_pallas.1} parent=11 // pred_check
          %p160 = pneg %p91
        $region14: #{swiglu_pallas.1} parent=11 // pred_check_branch
          %162 = sbr.rel (%p160) target = $region16
        $region15: #{swiglu_pallas.1} parent=11 // pred_region
          %s163 = smul.u32 4, %s28
          %s165 = ssub.s32 512, 512
          %166 = vsyncadd [#allocation7], %s165
          %s167 = smul.addr %s27, 4
          %s168 = sadd.s32 %s163, %s167
          %s169 = smul.addr %s168, 128
          %s170 = scalar_lea.hbm %s1, %s169
          %s171 = sshll.u32 [#allocation6], 4
          %s172 = int_to_ptr.vmem [resolvable:$true] %s171
          %177 = dma.hbm_to_vmem [thread:$0]  %s170, 512, %s172, [#allocation7], 128, 128, 8
        $region16: #{swiglu_pallas.1} parent=11 // pred_fallthru
          _
        // Predicated region
        $region17: #{swiglu_pallas.1} parent=11 // pred_check
          %p178 = pneg %p117
        $region18: #{swiglu_pallas.1} parent=11 // pred_check_branch
          %180 = sbr.rel (%p178) target = $region20
        $region19: #{swiglu_pallas.1} parent=11 // pred_region
          %p181 = scmp.lt.s32.totalorder %s27, 0
          %s182 = scalar_select %p181, %s27, 0
          %s183 = scalar_lea.vmem %s2, %s182
        $region20: #{swiglu_pallas.1} parent=11 // pred_fallthru
          _
      $region12: #{swiglu_pallas.1} parent=5 // pred_fallthru
        _
      %p184 = scmp.lt.s32.totalorder %s16, 2
      // Predicated region
      $region21: #{swiglu_pallas.1} parent=5 // pred_check
        %p185 = pneg %p184
      $region22: #{swiglu_pallas.1} parent=5 // pred_check_branch
        %187 = sbr.rel (%p185) target = $region24
      $region23: #{swiglu_pallas.1} parent=5 // pred_region
        // Predicated region
        $region25: #{swiglu_pallas.1} parent=23 // pred_check
          %p188 = pneg %p57
        $region26: #{swiglu_pallas.1} parent=23 // pred_check_branch
          %190 = sbr.rel (%p188) target = $region28
        $region27: #{swiglu_pallas.1} parent=23 // pred_region
          %s191 = sand.u32 %s47, 1
          %s192 = scalar_lea.sflag [#allocation4], %s191
          %s193 = sand.u32 %s47, 1
          %s194 = smul.addr %s193, 8
          %s195 = scalar_lea.vmem [#allocation3], %s194
          %s197 = ssub.s32 128, 128
          %198 = vsyncadd %s192, %s197
          %s199 = sadd.s32 %s25, %s23
          %s200 = smul.addr %s199, 128
          %s201 = scalar_lea.hbm %s0, %s200
          %s203 = sshll.u32 %s195, 4
          %s204 = int_to_ptr.vmem [resolvable:$true] %s203
          %206 = dma.hbm_to_vmem [thread:$0]  %s201, 128, %s204, %s192
        $region28: #{swiglu_pallas.1} parent=23 // pred_fallthru
          _
      $region24: #{swiglu_pallas.1} parent=5 // pred_fallthru
        _
      %p207 = scmp.le.s32.totalorder 1, %s16
      %p208 = scmp.lt.s32.totalorder %s16, 3
      %p209 = pnand %p207, %p208
      %p210 = pneg %p209
      // Predicated region
      $region29: #{swiglu_pallas.1} parent=5 // pred_check
        _
      $region30: #{swiglu_pallas.1} parent=5 // pred_check_branch
        %212 = sbr.rel (%p209) target = $region32
      $region31: #{swiglu_pallas.1} parent=5 // pred_region
        %s213 = ssub.s32 %s16, 1
        %s214 = sand.u32 %s50, 1
        %s215 = scalar_lea.sflag [#allocation4], %s214
        %s216 = sand.u32 %s50, 1
        %s217 = smul.addr %s216, 8
        %s218 = scalar_lea.vmem [#allocation3], %s217
        // Predicated region
        $region33: #{swiglu_pallas.1} parent=31 // pred_check
          %p219 = pneg %p63
        $region34: #{swiglu_pallas.1} parent=31 // pred_check_branch
          %221 = sbr.rel (%p219) target = $region36
        $region35: #{swiglu_pallas.1} parent=31 // pred_region
          %222 = dma.done %s215, 128
        $region36: #{swiglu_pallas.1} parent=31 // pred_fallthru
          _
        // Predicated region
        $region37: #{swiglu_pallas.1} parent=31 // pred_check
          %p223 = pneg %p91
        $region38: #{swiglu_pallas.1} parent=31 // pred_check_branch
          %225 = sbr.rel (%p223) target = $region40
        $region39: #{swiglu_pallas.1} parent=31 // pred_region
          %226 = dma.done [#allocation7], 512
        $region40: #{swiglu_pallas.1} parent=31 // pred_fallthru
          _
        %s227 = sand.u32 %s50, 1
        %s228 = scalar_lea.sflag [#allocation4], %s227
        %s229 = sand.u32 %s50, 1
        %s230 = smul.addr %s229, 8
        %s231 = scalar_lea.vmem [#allocation3], %s230
        %p232 = pneg %p63
        %p233 = pneg %p60
        %p234 = pneg %p91
        %p235 = pneg %p88
        %p236 = scmp.lt.s32.totalorder %s27, 0
        %s237 = scalar_select %p236, %s27, 0
        %s238 = scalar_lea.vmem %s2, %s237
        %p239 = pneg %p117
        %p240 = pneg %p114
        %p241 = pneg %p145
        %p242 = pneg %p142
        %s243 = sand.u32 %s132, 1
        %s244 = scalar_lea.sflag [#allocation5], %s243
        %s245 = sand.u32 %s132, 1
        %s246 = smul.addr %s245, 8
        %s247 = scalar_lea.vmem [#allocation8], %s246
        %s248 = smul.u32 4, %s28
        %p249 = scmp.lt.s32.totalorder %s27, 0
        %s250 = scalar_select %p249, %s27, 0
        %s251 = scalar_lea.vmem %s2, %s250
        %p252 = scmp.eq.s32.totalorder %s28, 0
        // Predicated region
        $region41: #{swiglu_pallas.1} parent=31 // pred_check
          %p253 = pneg %p252
        $region42: #{swiglu_pallas.1} parent=31 // pred_check_branch
          %255 = sbr.rel (%p253) target = $region44
        $region43: #{swiglu_pallas.1} parent=31 // pred_region
          %vm256 = vcmask 523264
          %257 = vst.msk [vmem:[#allocation2] sm:$0xff] %vm256, 0.0
        $region44: #{swiglu_pallas.1} parent=31 // pred_fallthru
          _
        %v258 = vld [vmem:[%s218] sm:$0xff]
        %v259 = vld [vmem:[#allocation6] sm:$0xff]
        %v260 = vld [vmem:[#allocation6 + $0x8] sm:$0xff]
        %v261 = vld [vmem:[#allocation6 + $0x10] sm:$0xff]
        %v262 = vld [vmem:[#allocation6 + $0x18] sm:$0xff]
        %v263 = vld [vmem:[#allocation2] sm:$0xff]
        %vm264 = vcmask 261120
        %v266 = vsel %vm264, %v258, 0
        %268 = vmatprep.subr.mxu0 0.0
        %269 = vmatpush1.msra.mxu0 0.0
        %270 = vmatprep.subr.mxu0 0.0
        %271 = vmatpush1.msra.mxu0 0.0
        %272 = vmatprep.subr.mxu0 0.0
        %273 = vmatpush1.msra.mxu0 0.0
        %274 = vmatprep.subr.mxu0 0.0
        %275 = vmatpush1.msra.mxu0 0.0
        %276 = vmatprep.subr.mxu0 0.0
        %277 = vmatpush1.msra.mxu0 0.0
        %278 = vmatprep.subr.mxu0 0.0
        %279 = vmatpush1.msra.mxu0 0.0
        %280 = vmatprep.subr.mxu0 0.0
        %281 = vmatpush1.msra.mxu0 0.0
        %282 = vmatprep.subr.mxu0 0.0
        %283 = vmatpush1.msra.mxu0 0.0
        %284 = vmatprep.subr.mxu0 0.0
        %285 = vmatpush1.msra.mxu0 0.0
        %286 = vmatprep.subr.mxu0 0.0
        %287 = vmatpush1.msra.mxu0 0.0
        %288 = vmatprep.subr.mxu0 0.0
        %289 = vmatpush1.msra.mxu0 0.0
        %290 = vmatprep.subr.mxu0 0.0
        %291 = vmatpush1.msra.mxu0 0.0
        %292 = vmatprep.subr.mxu0 0.0
        %293 = vmatpush1.msra.mxu0 %v262
        %294 = vmatprep.subr.mxu0 0.0
        %295 = vmatpush1.msra.mxu0 %v261
        %296 = vmatprep.subr.mxu0 0.0
        %297 = vmatpush1.msra.mxu0 %v260
        %298 = vmatprep.subr.mxu0 0.0
        %299 = vmatpush1.msra.mxu0 %v259
        %300 = vmatprep.subr.mxu0 0.0
        %301 = vmatpush2.msra.mxu0 0.0
        %302 = vmatprep.subr.mxu0 0.0
        %303 = vmatpush2.msra.mxu0 0.0
        %304 = vmatprep.subr.mxu0 0.0
        %305 = vmatpush2.msra.mxu0 0.0
        %306 = vmatprep.subr.mxu0 0.0
        %307 = vmatpush2.msra.mxu0 0.0
        %308 = vmatprep.subr.mxu0 0.0
        %309 = vmatpush2.msra.mxu0 0.0
        %310 = vmatprep.subr.mxu0 0.0
        %311 = vmatpush2.msra.mxu0 0.0
        %312 = vmatprep.subr.mxu0 0.0
        %313 = vmatpush2.msra.mxu0 0.0
        %314 = vmatprep.subr.mxu0 0.0
        %315 = vmatpush2.msra.mxu0 0.0
        %316 = vmatprep.subr.mxu0 0.0
        %317 = vmatpush2.msra.mxu0 0.0
        %318 = vmatprep.subr.mxu0 0.0
        %319 = vmatpush2.msra.mxu0 0.0
        %320 = vmatprep.subr.mxu0 0.0
        %321 = vmatpush2.msra.mxu0 0.0
        %322 = vmatprep.subr.mxu0 0.0
        %323 = vmatpush2.msra.mxu0 0.0
        %324 = vmatprep.subr.mxu0 0.0
        %325 = vmatpush2.msra.mxu0 0.0
        %326 = vmatprep.subr.mxu0 0.0
        %327 = vmatpush2.msra.mxu0 0.0
        %328 = vmatprep.subr.mxu0 0.0
        %329 = vmatpush2.msra.mxu0 0.0
        %330 = vmatprep.subr.mxu0 0.0
        %331 = vmatpush2.msra.mxu0 0.0
        %332 = vmatprep.mubr.f32.mxu0 0.0
        %333 = vmatmul.mubr.f32.gmra.mxu0 %v266
        %v334 = vpop.f32.mrf.mxu0
        %v335 = vadd.f32 0.0, %v334
        %v336 = vpop.f32.mrf.mxu0
        %337 = vdwg.mxu0
        %v338 = vadd.f32 %v263, %v335
        %vm339 = vcmask 523264
        %340 = vst.msk [vmem:[#allocation2] sm:$0xff] %vm339, %v338
        // Predicated region
        $region45: #{swiglu_pallas.1} parent=31 // pred_check
          %p341 = pneg %p252
        $region46: #{swiglu_pallas.1} parent=31 // pred_check_branch
          %343 = sbr.rel (%p341) target = $region48
        $region47: #{swiglu_pallas.1} parent=31 // pred_region
          %v344 = vld [vmem:[#allocation2] sm:$0xff]
          %v345 = vld [vmem:[%s251] sm:$0x1]
          %v347 = vlaneseq
          %v348 = vshrl.u32 %v347, 7
          %v349 = vsub.s32 0, %v348
          %v350 = vrot.slane %v345, %v349
          %v352 = vadd.f32 %v344, %v350
          %v353 = vxor.u32 %v352, 2147483648
          %v354 = vmul.f32 %v353, 1.442695
          %v355 = vpow.pop %v354
          %v356 = vadd.f32 %v355, 1.0
          %v357 = vrcp.pop %v356
          %v358 = vmul.f32 1.0, %v357
          %v359 = vmul.f32 %v352, %v358
          %361 = vrot.lane.b32.xlu0 %v359, 96
          %v362 = vpop.permute.xlu0 %361
          %v364 = vmul.f32 %v352, %v362
          %365 = vst.msk [vmem:[%s247] sm:$0xff] %vm264, %v364
        $region48: #{swiglu_pallas.1} parent=31 // pred_fallthru
          _
        %s366 = sand.u32 %s132, 1
        %s367 = scalar_lea.sflag [#allocation5], %s366
        %s368 = sand.u32 %s132, 1
        %s369 = smul.addr %s368, 8
        %s370 = scalar_lea.vmem [#allocation8], %s369
        // Predicated region
        $region49: #{swiglu_pallas.1} parent=31 // pred_check
          %p371 = pneg %p142
        $region50: #{swiglu_pallas.1} parent=31 // pred_check_branch
          %373 = sbr.rel (%p371) target = $region52
        $region51: #{swiglu_pallas.1} parent=31 // pred_region
          %s375 = ssub.s32 128, 128
          %376 = vsyncadd %s367, %s375
          %s377 = sadd.s32 %s27, %s26
          %s378 = smul.addr %s377, 128
          %s379 = scalar_lea.hbm %s3, %s378
          %s381 = sshll.u32 %s370, 4
          %s382 = int_to_ptr.vmem [resolvable:$true] %s381
          %384 = dma.vmem_to_hbm [thread:$0]  %s382, 128, %s379, %s367
        $region52: #{swiglu_pallas.1} parent=31 // pred_fallthru
          _
      $region32: #{swiglu_pallas.1} parent=5 // pred_fallthru
        _
      %p385 = scmp.le.s32.totalorder 2, %s16
      // Predicated region
      $region53: #{swiglu_pallas.1} parent=5 // pred_check
        %p386 = pneg %p385
      $region54: #{swiglu_pallas.1} parent=5 // pred_check_branch
        %388 = sbr.rel (%p386) target = $region56
      $region55: #{swiglu_pallas.1} parent=5 // pred_region
        %s389 = ssub.s32 %s16, 2
        // Predicated region
        $region57: #{swiglu_pallas.1} parent=55 // pred_check
          %p390 = pneg %p148
        $region58: #{swiglu_pallas.1} parent=55 // pred_check_branch
          %392 = sbr.rel (%p390) target = $region60
        $region59: #{swiglu_pallas.1} parent=55 // pred_region
          %s393 = sand.u32 %s133, 1
          %s394 = scalar_lea.sflag [#allocation5], %s393
          %s395 = sand.u32 %s133, 1
          %s396 = smul.addr %s395, 8
          %s397 = scalar_lea.vmem [#allocation8], %s396
          %398 = dma.done %s394, 128
        $region60: #{swiglu_pallas.1} parent=55 // pred_fallthru
          _
      $region56: #{swiglu_pallas.1} parent=5 // pred_fallthru
        _
    $region6: #{swiglu_pallas.1} parent=1 // loop_footer
      %s20 = sadd.s32 1, %s16
    $region7: #{swiglu_pallas.1} parent=1 // loop_footer_branch
      %15 = sbr.rel target = $region3
    $region8: #{swiglu_pallas.1} parent=1 // loop_exit
      _
    %399 = vsyncpa [#allocation4], 1
    %s400 = scalar_lea.sflag [#allocation4], 1
    %401 = vsyncpa %s400, 1
    %402 = vsyncpa [#allocation7], 1
    %403 = vsyncpa [#allocation5], 1
    %s404 = scalar_lea.sflag [#allocation5], 1
    %405 = vsyncpa %s404, 1

</llo_original>
